<compile_context>
chip_gen: v7x
topology: tpu7x:2x2x1
jax: 0.10.0
libtpu: 0.0.40
codegen_flags: <defaults>
</compile_context>

<pallas_src>
import jax
import jax.numpy as jnp
from jax.experimental import pallas as pl
from jax.experimental.pallas import tpu as pltpu

SMOOTH = 1.0
LANES = 128
SUBLANES = 8
MAX_TILE_ROWS = 4096  # 4096 * 128 * 4B = 2 MiB f32 per input block


def _round_up(x, m):
    return (x + m - 1) // m * m


def _dice_partial_kernel(x_ref, t_ref, inter_ref, p2_ref, t2_ref):
    # x_ref / t_ref: (tile_rows, 128) in native dtype -> cast per-tile.
    x = x_ref[...].astype(jnp.float32)
    t = t_ref[...].astype(jnp.float32)

    # Regroup sublanes: (tile_rows, 128) -> (tile_rows//8, 8, 128).
    # This is layout-preserving (one (8,128) vreg tile per leading index),
    # so the reduction over axis 0 is pure VALU adds; the cross-lane /
    # cross-sublane reduce is deferred to JAX.
    g = x.shape[0] // SUBLANES
    x3 = x.reshape(g, SUBLANES, LANES)
    t3 = t.reshape(g, SUBLANES, LANES)

    inter_ref[...] = jnp.sum(x3 * t3, axis=0, keepdims=True)  # (1, 8, 128)
    p2_ref[...] = jnp.sum(x3 * x3, axis=0, keepdims=True)
    t2_ref[...] = jnp.sum(t3 * t3, axis=0, keepdims=True)


@jax.jit
def dice_loss_pow(inputs, target):
    """inputs, target: arrays of identical total size (any shape, any float/int dtype)."""
    total = inputs.size
    assert target.size == total, "inputs and target must have the same number of elements"

    x = inputs.reshape(-1)
    t = target.reshape(-1)

    rows = (total + LANES - 1) // LANES
    tile_rows = min(MAX_TILE_ROWS, _round_up(rows, SUBLANES))
    padded_rows = _round_up(rows, tile_rows)
    num_tiles = padded_rows // tile_rows

    pad = padded_rows * LANES - total
    if pad:  # zero padding contributes 0 to every sum -> exact
        x = jnp.pad(x, (0, pad))
        t = jnp.pad(t, (0, pad))

    x = x.reshape(padded_rows, LANES)
    t = t.reshape(padded_rows, LANES)

    part = jax.ShapeDtypeStruct((num_tiles, SUBLANES, LANES), jnp.float32)

    inter_p, p2_p, t2_p = pl.pallas_call(
        _dice_partial_kernel,
        out_shape=(part, part, part),
        grid_spec=pltpu.PrefetchScalarGridSpec(
            num_scalar_prefetch=0,
            grid=(num_tiles,),
            in_specs=[
                pl.BlockSpec((tile_rows, LANES), lambda i: (i, 0)),
                pl.BlockSpec((tile_rows, LANES), lambda i: (i, 0)),
            ],
            out_specs=[
                pl.BlockSpec((1, SUBLANES, LANES), lambda i: (i, 0, 0)),
                pl.BlockSpec((1, SUBLANES, LANES), lambda i: (i, 0, 0)),
                pl.BlockSpec((1, SUBLANES, LANES), lambda i: (i, 0, 0)),
            ],
        ),
        compiler_params=pltpu.CompilerParams(
            dimension_semantics=("parallel",),   # no shared state across steps
            vmem_limit_bytes=32 * 1024 * 1024,
        ),
    )(x, t)

    # Tiny final reduction + dice formula in plain JAX (one 12 KiB/tile slab).
    inter = jnp.sum(inter_p)
    p2 = jnp.sum(p2_p)
    t2 = jnp.sum(t2_p)
    num = 2.0 * inter + SMOOTH
    den = p2 + t2 + SMOOTH
    return (1.0 - num / den).astype(jnp.float32)


def _reference(inputs, target):
    """Pure-JAX mirror of the PyTorch DiceLoss_pow.forward."""
    n = target.shape[0]
    x = inputs.reshape(n, -1).astype(jnp.float32)
    t = target.reshape(n, -1).astype(jnp.float32)
    inter = jnp.sum(x * t)
    num = 2.0 * inter + SMOOTH
    den = jnp.sum(x * x) + jnp.sum(t * t) + SMOOTH
    return 1.0 - num / den


if __name__ == "__main__":
    key = jax.random.PRNGKey(0)
    k1, k2 = jax.random.split(key)

    N, C, H, W = 2, 4, 16, 16
    inputs = jax.nn.sigmoid(jax.random.normal(k1, (N, C, H, W), dtype=jnp.float32))
    target = (jax.random.uniform(k2, (N, C, H, W)) > 0.5).astype(jnp.float32)

    out = dice_loss_pow(inputs, target)
    out = jax.block_until_ready(out)

    ref = _reference(inputs, target)
    assert jnp.allclose(out, ref, atol=1e-5, rtol=1e-5), (out, ref)

    print("KERNEL_OK")
</pallas_src>

<mosaic_0001>
module attributes {stable_mosaic.version = 11 : i64} {
  func.func @_dice_partial_kernel(%arg0: i32, %arg1: memref<16x128xf32, #tpu.memory_space<vmem>>, %arg2: memref<16x128xf32, #tpu.memory_space<vmem>>, %arg3: memref<1x8x128xf32, #tpu.memory_space<vmem>>, %arg4: memref<1x8x128xf32, #tpu.memory_space<vmem>>, %arg5: memref<1x8x128xf32, #tpu.memory_space<vmem>>) attributes {dimension_semantics = [#tpu.dimension_semantics<parallel>], iteration_bounds = array<i64: 1>, scalar_prefetch = 0 : i64, scratch_operands = 0 : i64, tpu.core_type = #tpu.core_type<tc>, window_params = [{transform_indices = @transform_0, window_bounds = array<i64: 16, 128>}, {transform_indices = @transform_1, window_bounds = array<i64: 16, 128>}, {transform_indices = @transform_2, window_bounds = array<i64: 1, 8, 128>}, {transform_indices = @transform_3, window_bounds = array<i64: 1, 8, 128>}, {transform_indices = @transform_4, window_bounds = array<i64: 1, 8, 128>}]} {
    %c0 = arith.constant 0 : index
    %c0_0 = arith.constant 0 : index
    %0 = vector.load %arg1[%c0, %c0_0] : memref<16x128xf32, #tpu.memory_space<vmem>>, vector<16x128xf32>
    %c0_1 = arith.constant 0 : index
    %c0_2 = arith.constant 0 : index
    %1 = vector.load %arg2[%c0_1, %c0_2] : memref<16x128xf32, #tpu.memory_space<vmem>>, vector<16x128xf32>
    %2 = vector.shape_cast %0 : vector<16x128xf32> to vector<2x8x128xf32>
    %3 = vector.shape_cast %1 : vector<16x128xf32> to vector<2x8x128xf32>
    %4 = arith.mulf %2, %3 : vector<2x8x128xf32>
    %cst = arith.constant dense<0.000000e+00> : vector<8x128xf32>
    %5 = vector.multi_reduction <add>, %4, %cst [0] : vector<2x8x128xf32> to vector<8x128xf32>
    %6 = vector.shape_cast %5 : vector<8x128xf32> to vector<1x8x128xf32>
    %c0_3 = arith.constant 0 : index
    %c0_4 = arith.constant 0 : index
    %c0_5 = arith.constant 0 : index
    %7 = vector.load %arg3[%c0_3, %c0_4, %c0_5] : memref<1x8x128xf32, #tpu.memory_space<vmem>>, vector<1x8x128xf32>
    tpu.vector_store %arg3[%c0_3, %c0_4, %c0_5], %6 {strides = array<i32>} : memref<1x8x128xf32, #tpu.memory_space<vmem>>, vector<1x8x128xf32>,
    %8 = arith.mulf %2, %2 : vector<2x8x128xf32>
    %cst_6 = arith.constant dense<0.000000e+00> : vector<8x128xf32>
    %9 = vector.multi_reduction <add>, %8, %cst_6 [0] : vector<2x8x128xf32> to vector<8x128xf32>
    %10 = vector.shape_cast %9 : vector<8x128xf32> to vector<1x8x128xf32>
    %c0_7 = arith.constant 0 : index
    %c0_8 = arith.constant 0 : index
    %c0_9 = arith.constant 0 : index
    %11 = vector.load %arg4[%c0_7, %c0_8, %c0_9] : memref<1x8x128xf32, #tpu.memory_space<vmem>>, vector<1x8x128xf32>
    tpu.vector_store %arg4[%c0_7, %c0_8, %c0_9], %10 {strides = array<i32>} : memref<1x8x128xf32, #tpu.memory_space<vmem>>, vector<1x8x128xf32>,
    %12 = arith.mulf %3, %3 : vector<2x8x128xf32>
    %cst_10 = arith.constant dense<0.000000e+00> : vector<8x128xf32>
    %13 = vector.multi_reduction <add>, %12, %cst_10 [0] : vector<2x8x128xf32> to vector<8x128xf32>
    %14 = vector.shape_cast %13 : vector<8x128xf32> to vector<1x8x128xf32>
    %c0_11 = arith.constant 0 : index
    %c0_12 = arith.constant 0 : index
    %c0_13 = arith.constant 0 : index
    %15 = vector.load %arg5[%c0_11, %c0_12, %c0_13] : memref<1x8x128xf32, #tpu.memory_space<vmem>>, vector<1x8x128xf32>
    tpu.vector_store %arg5[%c0_11, %c0_12, %c0_13], %14 {strides = array<i32>} : memref<1x8x128xf32, #tpu.memory_space<vmem>>, vector<1x8x128xf32>,
    return
  }
  func.func @transform_0(%arg0: i32) -> (i32, i32) {
    %c0_i32 = arith.constant 0 : i32
    %c0_i32_0 = arith.constant 0 : i32
    return %arg0, %c0_i32 : i32, i32
  }
  func.func @transform_1(%arg0: i32) -> (i32, i32) {
    %c0_i32 = arith.constant 0 : i32
    %c0_i32_0 = arith.constant 0 : i32
    return %arg0, %c0_i32 : i32, i32
  }
  func.func @transform_2(%arg0: i32) -> (i32, i32, i32) {
    %c0_i32 = arith.constant 0 : i32
    %c0_i32_0 = arith.constant 0 : i32
    %c0_i32_1 = arith.constant 0 : i32
    return %arg0, %c0_i32, %c0_i32_0 : i32, i32, i32
  }
  func.func @transform_3(%arg0: i32) -> (i32, i32, i32) {
    %c0_i32 = arith.constant 0 : i32
    %c0_i32_0 = arith.constant 0 : i32
    %c0_i32_1 = arith.constant 0 : i32
    return %arg0, %c0_i32, %c0_i32_0 : i32, i32, i32
  }
  func.func @transform_4(%arg0: i32) -> (i32, i32, i32) {
    %c0_i32 = arith.constant 0 : i32
    %c0_i32_0 = arith.constant 0 : i32
    %c0_i32_1 = arith.constant 0 : i32
    return %arg0, %c0_i32, %c0_i32_0 : i32, i32, i32
  }
}

</mosaic_0001>

<llo_original>
// kernel: dice_loss_pow.1
$region0: #{dice_loss_pow.1}
  #allocation0 [shape = 'u32[]', space=smem, size = 0x4, offset = 0x4, fixed_abs, tag = 'smem constant byte address 0x4 - core index']
  #allocation1 [shape = 'u32[144,128]{1,0:T(1,128)}', space=vmem, size = 0x12000, scoped, tag = 'internal scratch']
  %s0 = inlined_call_operand.vmem [shape: f32[16,128], index: 0, kind: input, shape index: {}]
  %s1 = inlined_call_operand.vmem [shape: f32[16,128], index: 1, kind: input, shape index: {}]
  %s2 = inlined_call_operand.vmem [shape: f32[1,8,128], index: 2, kind: output, shape index: {0}]
  %s3 = inlined_call_operand.vmem [shape: f32[1,8,128], index: 3, kind: output, shape index: {1}]
  %s4 = inlined_call_operand.vmem [shape: f32[1,8,128], index: 4, kind: output, shape index: {2}]
  %5 = xla_tuple %s2, %s3, %s4
  %s6 = sld [smem:[#allocation0]]
  $region34: #{dice_loss_pow.1} parent=0
    _
  %s8 = ssub.s32 1, %s6
  %s9 = scalar_select 0, %s8, %s6
  // Predicated region
  $region2: #{dice_loss_pow.1} parent=0 // pred_check
    _
  $region3: #{dice_loss_pow.1} parent=0 // pred_check_branch
    %11 = sbr.rel (0) target = $region5
  $region4: #{dice_loss_pow.1} parent=0 // pred_region
    _
  $region5: #{dice_loss_pow.1} parent=0 // pred_fallthru
    _
  // Predicated region
  $region6: #{dice_loss_pow.1} parent=0 // pred_check
    _
  $region7: #{dice_loss_pow.1} parent=0 // pred_check_branch
    %13 = sbr.rel (0) target = $region9
  $region8: #{dice_loss_pow.1} parent=0 // pred_region
    _
  $region9: #{dice_loss_pow.1} parent=0 // pred_fallthru
    _
  %v14 = vld [vmem:[%s0] sm:$0xff]
  %v15 = vld [vmem:[%s0 + $0x8] sm:$0xff]
  %v16 = vld [vmem:[%s1] sm:$0xff]
  %v17 = vld [vmem:[%s1 + $0x8] sm:$0xff]
  %v18 = vmul.f32 %v14, %v16
  %v19 = vmul.f32 %v15, %v17
  %v20 = vadd.f32 %v18, %v19
  %21 = vst [vmem:[%s2] sm:$0xff] %v20
  %v22 = vmul.f32 %v14, %v14
  %v23 = vmul.f32 %v15, %v15
  %v24 = vadd.f32 %v22, %v23
  %25 = vst [vmem:[%s3] sm:$0xff] %v24
  %v26 = vmul.f32 %v16, %v16
  %v27 = vmul.f32 %v17, %v17
  %v28 = vadd.f32 %v26, %v27
  %29 = vst [vmem:[%s4] sm:$0xff] %v28
  // Predicated region
  $region10: #{dice_loss_pow.1} parent=0 // pred_check
    _
  $region11: #{dice_loss_pow.1} parent=0 // pred_check_branch
    %31 = sbr.rel (0) target = $region13
  $region12: #{dice_loss_pow.1} parent=0 // pred_region
    _
  $region13: #{dice_loss_pow.1} parent=0 // pred_fallthru
    _
  // Predicated region
  $region14: #{dice_loss_pow.1} parent=0 // pred_check
    _
  $region15: #{dice_loss_pow.1} parent=0 // pred_check_branch
    %33 = sbr.rel (0) target = $region17
  $region16: #{dice_loss_pow.1} parent=0 // pred_region
    _
  $region17: #{dice_loss_pow.1} parent=0 // pred_fallthru
    _
  // Predicated region
  $region18: #{dice_loss_pow.1} parent=0 // pred_check
    _
  $region19: #{dice_loss_pow.1} parent=0 // pred_check_branch
    %35 = sbr.rel (0) target = $region21
  $region20: #{dice_loss_pow.1} parent=0 // pred_region
    _
  $region21: #{dice_loss_pow.1} parent=0 // pred_fallthru
    _
  // Predicated region
  $region22: #{dice_loss_pow.1} parent=0 // pred_check
    _
  $region23: #{dice_loss_pow.1} parent=0 // pred_check_branch
    %37 = sbr.rel (0) target = $region25
  $region24: #{dice_loss_pow.1} parent=0 // pred_region
    _
  $region25: #{dice_loss_pow.1} parent=0 // pred_fallthru
    _
  // Predicated region
  $region26: #{dice_loss_pow.1} parent=0 // pred_check
    _
  $region27: #{dice_loss_pow.1} parent=0 // pred_check_branch
    %39 = sbr.rel (0) target = $region29
  $region28: #{dice_loss_pow.1} parent=0 // pred_region
    _
  $region29: #{dice_loss_pow.1} parent=0 // pred_fallthru
    _
  // Predicated region
  $region30: #{dice_loss_pow.1} parent=0 // pred_check
    _
  $region31: #{dice_loss_pow.1} parent=0 // pred_check_branch
    %41 = sbr.rel (0) target = $region33
  $region32: #{dice_loss_pow.1} parent=0 // pred_region
    _
  $region33: #{dice_loss_pow.1} parent=0 // pred_fallthru
    _

</llo_original>
